<compile_context>
chip_gen: v7x
topology: tpu7x:2x2x1
jax: 0.10.0
libtpu: 0.0.40
codegen_flags: <defaults>
</compile_context>

<pallas_src>
import functools

import jax
import jax.numpy as jnp
from jax.experimental import pallas as pl
from jax.experimental.pallas import tpu as pltpu


_VMEM_BLOCK_BUDGET = 24 * 1024 * 1024   # blocks + in-kernel f32 temporaries
_VMEM_LIMIT_BYTES = 40 * 1024 * 1024    # <= 64 MiB physical VMEM on v7x
_MAX_BLK_N = 8192                       # keeps pred tiles in the 2-4 MiB sweet spot


def _round_up(x, m):
    return ((x + m - 1) // m) * m


def _default_num_parallel():
    """2 TensorCores per chip on v7x; 1 on v5e/v6e. Best-effort detection."""
    try:
        kind = jax.devices()[0].device_kind.lower()
    except Exception:
        return 1
    return 2 if "v7" in kind else 1


def _softmax_gumbel_kernel(pred_ref, tgt_ref, acc_ref, *,
                           label_smoothing, n_valid, blk_n, inner, needs_mask):
    c = pl.program_id(0)   # chunk (per-TensorCore on v7x)
    i = pl.program_id(1)   # sequential steps within the chunk

    # Zero this chunk's resident per-lane accumulator at the start of its loop.
    @pl.when(i == 0)
    def _():
        acc_ref[...] = jnp.zeros_like(acc_ref)

    pred = pred_ref[...].astype(jnp.float32)               # (blk_n, C)
    nc = pred.shape[-1]
    inv_c = 1.0 / nc
    ls = label_smoothing

    # Log-space pieces (no NaN cleanup needed):
    #   -log softmax = lse - shifted
    #   -log gumbel  = exp(-clip(pred-2,-4,10)) = exp(clip(2-pred,-10,4))
    m = jnp.max(pred, axis=-1, keepdims=True)               # (blk_n, 1)  XLU
    shifted = pred - m
    lse = jnp.log(jnp.sum(jnp.exp(shifted), axis=-1, keepdims=True))   # (blk_n,1)
    g = jnp.exp(jnp.clip(2.0 - pred, -10.0, 4.0))            # (blk_n, C)  EUP
    x = g - shifted                                          # (blk_n, C)

    # Per-row loss: loss_i = lse_i + sum_c w_ic * x_ic  (smoothed one-hot implied).
    if needs_mask:
        # Padding rows only exist when rows_padded != N (static); mask at row
        # granularity (blk_n,1), never per element.
        row0 = (c * inner + i) * blk_n
        row_ids = row0 + jax.lax.broadcasted_iota(jnp.int32, (blk_n, 1), 0)
        valid = (row_ids < n_valid).astype(jnp.float32)      # (blk_n, 1)
        hi = (1.0 - ls + ls * inv_c) * valid
        lo = (ls * inv_c) * valid
        lse_eff = lse * valid
    else:
        hi = jnp.float32(1.0 - ls + ls * inv_c)
        lo = jnp.float32(ls * inv_c)
        lse_eff = lse

    lane = jax.lax.broadcasted_iota(jnp.int32, (1, nc), 1)   # (1, C) only
    is_tgt = lane == tgt_ref[...]                            # broadcast vs (blk_n,1)
    w = jnp.where(is_tgt, hi, lo)                            # (blk_n, C)
    combined = x * w + lse_eff * inv_c                       # (blk_n, C)

    # Fold rows into per-lane partial sums (pure vadds); final cross-lane reduce
    # is done once in the wrapper on a tiny (num_parallel*8, C) array.
    acc_ref[...] += jnp.sum(combined.reshape(blk_n // 8, 8, nc), axis=0)


def softmax_gumbel_loss(pred, targets, label_smoothing=0.0, blk_n=None,
                        num_parallel=None):
    """Pallas implementation of SoftmaxGumbel.forward for class-index targets."""
    # TODO(synk): the soft-target branch (targets.shape == pred.shape) of the
    # torch module is not implemented; this covers the class-index branch.
    # TODO(synk): the class dim C is not blocked; vocab-scale C would need an
    # online logsumexp across C tiles (required before running huge C on v7x).
    N, C = pred.shape
    label_smoothing = float(label_smoothing)
    tgt = targets.astype(jnp.int32).reshape(N, 1)

    if num_parallel is None:
        num_parallel = _default_num_parallel()

    if blk_n is None:
        # Budget per row: double-buffered pred block + ~4x f32 temporaries
        # (shifted, g, x/w, combined) + the lane-padded (blk_n,1) int32 target
        # block (512 B per row per buffer, double-buffered).
        pred_row = 2 * C * jnp.dtype(pred.dtype).itemsize
        temp_row = 4 * C * 4
        tgt_row = 2 * 512
        per_row = pred_row + temp_row + tgt_row
        rows_by_vmem = max(8, _VMEM_BLOCK_BUDGET // per_row)
        blk_n = min(_MAX_BLK_N, rows_by_vmem, _round_up(N, 8))
    blk_n = max(8, (blk_n // 8) * 8)

    total_blocks = -(-N // blk_n)
    num_parallel = max(1, min(int(num_parallel), total_blocks))
    inner = -(-total_blocks // num_parallel)
    rows_padded = blk_n * num_parallel * inner

    if rows_padded != N:
        pad = rows_padded - N
        pred = jnp.pad(pred, ((0, pad), (0, 0)))
        tgt = jnp.pad(tgt, ((0, pad), (0, 0)))
    needs_mask = rows_padded != N

    kernel = functools.partial(
        _softmax_gumbel_kernel,
        label_smoothing=label_smoothing, n_valid=N, blk_n=blk_n,
        inner=inner, needs_mask=needs_mask)

    partials = pl.pallas_call(
        kernel,
        out_shape=jax.ShapeDtypeStruct((num_parallel * 8, C), jnp.float32),
        grid_spec=pltpu.PrefetchScalarGridSpec(
            num_scalar_prefetch=0,
            grid=(num_parallel, inner),
            in_specs=[
                pl.BlockSpec((blk_n, C), lambda c, i: (c * inner + i, 0)),
                pl.BlockSpec((blk_n, 1), lambda c, i: (c * inner + i, 0)),
            ],
            out_specs=pl.BlockSpec((8, C), lambda c, i: (c, 0)),
        ),
        compiler_params=pltpu.CompilerParams(
            dimension_semantics=("parallel", "arbitrary"),
            vmem_limit_bytes=_VMEM_LIMIT_BYTES),
    )(pred, tgt)

    loss_sum = jnp.sum(partials)
    # y_onehot_smoothed.sum() == N exactly (each smoothed row sums to 1).
    return loss_sum / jnp.float32(N)


def _reference_loss(pred, targets, label_smoothing=0.0):
    nc = pred.shape[-1]
    y = jax.nn.one_hot(targets, nc, dtype=jnp.float32)
    y = y * (1.0 - label_smoothing) + label_smoothing / nc
    soft = jax.nn.softmax(pred, axis=-1)
    gumb = jnp.exp(-jnp.exp(-jnp.clip(pred - 2.0, -4.0, 10.0)))
    loss = -(jnp.log(soft * gumb) * y)
    loss = jnp.where(jnp.isnan(loss), 0.0, loss)
    return loss.sum() / y.sum()


if __name__ == "__main__":
    key = jax.random.PRNGKey(0)
    k_pred, k_tgt = jax.random.split(key)

    N, C = 19, 128  # odd N exercises the remainder-masking path
    pred = 2.0 * jax.random.normal(k_pred, (N, C), dtype=jnp.float32)
    targets = jax.random.randint(k_tgt, (N,), 0, C, dtype=jnp.int32)

    # Default tiling / num_parallel.
    for ls in (0.1, 0.0):
        out = jax.block_until_ready(
            softmax_gumbel_loss(pred, targets, label_smoothing=ls))
        ref = _reference_loss(pred, targets, label_smoothing=ls)
        assert jnp.allclose(out, ref, rtol=1e-4, atol=1e-4), (ls, out, ref)

    # Multi-chunk / multi-inner-step grid with row masking (forced small blocks).
    out = jax.block_until_ready(
        softmax_gumbel_loss(pred, targets, label_smoothing=0.1,
                            blk_n=8, num_parallel=2))
    ref = _reference_loss(pred, targets, label_smoothing=0.1)
    assert jnp.allclose(out, ref, rtol=1e-4, atol=1e-4), (out, ref)

    print("KERNEL_OK")
</pallas_src>

<mosaic_0001>
module attributes {stable_mosaic.version = 11 : i64} {
  func.func @_softmax_gumbel_kernel(%arg0: i32, %arg1: i32, %arg2: memref<24x128xf32, #tpu.memory_space<vmem>>, %arg3: memref<24x1xi32, #tpu.memory_space<vmem>>, %arg4: memref<8x128xf32, #tpu.memory_space<vmem>>) attributes {dimension_semantics = [#tpu.dimension_semantics<parallel>, #tpu.dimension_semantics<arbitrary>], iteration_bounds = array<i64: 1, 1>, scalar_prefetch = 0 : i64, scratch_operands = 0 : i64, tpu.core_type = #tpu.core_type<tc>, window_params = [{transform_indices = @transform_0, window_bounds = array<i64: 24, 128>}, {transform_indices = @transform_1, window_bounds = array<i64: 24, 1>}, {transform_indices = @transform_2, window_bounds = array<i64: 8, 128>}]} {
    %c0_i32 = arith.constant 0 : i32
    %0 = arith.cmpi eq, %arg1, %c0_i32 : i32
    %1 = arith.extui %0 : i1 to i32
    %c0_i32_0 = arith.constant 0 : i32
    %2 = arith.cmpi ne, %1, %c0_i32_0 : i32
    scf.if %2 {
      %cst_16 = arith.constant 0.000000e+00 : f32
      %55 = vector.broadcast %cst_16 : f32 to vector<8x128xf32>
      %c0_17 = arith.constant 0 : index
      %c0_18 = arith.constant 0 : index
      %56 = vector.load %arg4[%c0_17, %c0_18] : memref<8x128xf32, #tpu.memory_space<vmem>>, vector<8x128xf32>
      tpu.vector_store %arg4[%c0_17, %c0_18], %55 {strides = array<i32>} : memref<8x128xf32, #tpu.memory_space<vmem>>, vector<8x128xf32>,
    } else {
    }
    %c0 = arith.constant 0 : index
    %c0_1 = arith.constant 0 : index
    %3 = vector.load %arg2[%c0, %c0_1] : memref<24x128xf32, #tpu.memory_space<vmem>>, vector<24x128xf32>
    %cst = arith.constant dense<0xFF800000> : vector<24xf32>
    %4 = vector.multi_reduction <maximumf>, %3, %cst [1] : vector<24x128xf32> to vector<24xf32>
    %5 = vector.shape_cast %4 : vector<24xf32> to vector<24x1xf32>
    %6 = vector.broadcast %5 : vector<24x1xf32> to vector<24x128xf32>
    %7 = arith.subf %3, %6 : vector<24x128xf32>
    %8 = math.exp %7 : vector<24x128xf32>
    %cst_2 = arith.constant dense<0.000000e+00> : vector<24xf32>
    %9 = vector.multi_reduction <add>, %8, %cst_2 [1] : vector<24x128xf32> to vector<24xf32>
    %10 = vector.shape_cast %9 : vector<24xf32> to vector<24x1xf32>
    %11 = math.log %10 : vector<24x1xf32>
    %cst_3 = arith.constant 2.000000e+00 : f32
    %12 = vector.broadcast %cst_3 : f32 to vector<24x128xf32>
    %13 = arith.subf %12, %3 : vector<24x128xf32>
    %cst_4 = arith.constant -1.000000e+01 : f32
    %cst_5 = arith.constant 4.000000e+00 : f32
    %14 = vector.broadcast %cst_4 : f32 to vector<24x128xf32>
    %15 = arith.maximumf %14, %13 : vector<24x128xf32>
    %16 = vector.broadcast %cst_5 : f32 to vector<24x128xf32>
    %17 = arith.minimumf %16, %15 : vector<24x128xf32>
    %18 = math.exp %17 : vector<24x128xf32>
    %19 = arith.subf %18, %7 : vector<24x128xf32>
    %c1_i32 = arith.constant 1 : i32
    %20 = arith.muli %arg0, %c1_i32 : i32
    %21 = arith.addi %20, %arg1 : i32
    %c24_i32 = arith.constant 24 : i32
    %22 = arith.muli %21, %c24_i32 : i32
    %23 = tpu.iota {dimensions = array<i32: 0>} : vector<24x1xi32>
    %24 = vector.broadcast %22 : i32 to vector<24x1xi32>
    %25 = arith.addi %24, %23 : vector<24x1xi32>
    %c19_i32 = arith.constant 19 : i32
    %26 = vector.broadcast %c19_i32 : i32 to vector<24x1xi32>
    %27 = arith.cmpi slt, %25, %26 : vector<24x1xi32>
    %28 = arith.extui %27 : vector<24x1xi1> to vector<24x1xi32>
    %29 = arith.sitofp %28 : vector<24x1xi32> to vector<24x1xf32>
    %cst_6 = arith.constant 0.900781273 : f32
    %30 = vector.broadcast %cst_6 : f32 to vector<24x1xf32>
    %31 = arith.mulf %30, %29 : vector<24x1xf32>
    %cst_7 = arith.constant 7.812500e-04 : f32
    %32 = vector.broadcast %cst_7 : f32 to vector<24x1xf32>
    %33 = arith.mulf %32, %29 : vector<24x1xf32>
    %34 = arith.mulf %11, %29 : vector<24x1xf32>
    %35 = tpu.iota {dimensions = array<i32: 1>} : vector<1x128xi32>
    %c0_8 = arith.constant 0 : index
    %c0_9 = arith.constant 0 : index
    %36 = vector.load %arg3[%c0_8, %c0_9] : memref<24x1xi32, #tpu.memory_space<vmem>>, vector<24x1xi32>
    %37 = vector.broadcast %35 : vector<1x128xi32> to vector<24x128xi32>
    %38 = vector.broadcast %36 : vector<24x1xi32> to vector<24x128xi32>
    %39 = arith.cmpi eq, %37, %38 : vector<24x128xi32>
    %40 = vector.shape_cast %31 : vector<24x1xf32> to vector<24x1xf32>
    %41 = vector.broadcast %40 : vector<24x1xf32> to vector<24x128xf32>
    %42 = vector.shape_cast %33 : vector<24x1xf32> to vector<24x1xf32>
    %43 = vector.broadcast %42 : vector<24x1xf32> to vector<24x128xf32>
    %44 = arith.select %39, %41, %43 : vector<24x128xi1>, vector<24x128xf32>
    %45 = arith.mulf %19, %44 : vector<24x128xf32>
    %cst_10 = arith.constant 7.812500e-03 : f32
    %46 = vector.broadcast %cst_10 : f32 to vector<24x1xf32>
    %47 = arith.mulf %34, %46 : vector<24x1xf32>
    %48 = vector.broadcast %47 : vector<24x1xf32> to vector<24x128xf32>
    %49 = arith.addf %45, %48 : vector<24x128xf32>
    %c0_11 = arith.constant 0 : index
    %c0_12 = arith.constant 0 : index
    %50 = vector.load %arg4[%c0_11, %c0_12] : memref<8x128xf32, #tpu.memory_space<vmem>>, vector<8x128xf32>
    %51 = vector.shape_cast %49 : vector<24x128xf32> to vector<3x8x128xf32>
    %cst_13 = arith.constant dense<0.000000e+00> : vector<8x128xf32>
    %52 = vector.multi_reduction <add>, %51, %cst_13 [0] : vector<3x8x128xf32> to vector<8x128xf32>
    %53 = arith.addf %50, %52 : vector<8x128xf32>
    %c0_14 = arith.constant 0 : index
    %c0_15 = arith.constant 0 : index
    %54 = vector.load %arg4[%c0_14, %c0_15] : memref<8x128xf32, #tpu.memory_space<vmem>>, vector<8x128xf32>
    tpu.vector_store %arg4[%c0_14, %c0_15], %53 {strides = array<i32>} : memref<8x128xf32, #tpu.memory_space<vmem>>, vector<8x128xf32>,
    return
  }
  func.func @transform_0(%arg0: i32, %arg1: i32) -> (i32, i32) {
    %c1_i32 = arith.constant 1 : i32
    %0 = arith.muli %arg0, %c1_i32 : i32
    %1 = arith.addi %0, %arg1 : i32
    %c0_i32 = arith.constant 0 : i32
    %c0_i32_0 = arith.constant 0 : i32
    return %1, %c0_i32 : i32, i32
  }
  func.func @transform_1(%arg0: i32, %arg1: i32) -> (i32, i32) {
    %c1_i32 = arith.constant 1 : i32
    %0 = arith.muli %arg0, %c1_i32 : i32
    %1 = arith.addi %0, %arg1 : i32
    %c0_i32 = arith.constant 0 : i32
    %c0_i32_0 = arith.constant 0 : i32
    return %1, %c0_i32 : i32, i32
  }
  func.func @transform_2(%arg0: i32, %arg1: i32) -> (i32, i32) {
    %c0_i32 = arith.constant 0 : i32
    %c0_i32_0 = arith.constant 0 : i32
    return %arg0, %c0_i32 : i32, i32
  }
}

</mosaic_0001>

<llo_original>
// kernel: tpu_custom_call.1
$region0: #{tpu_custom_call.1}
  #allocation0 [shape = 'u32[]', space=smem, size = 0x4, offset = 0x4, fixed_abs, tag = 'smem constant byte address 0x4 - core index']
  #allocation1 [shape = 'u32[144,128]{1,0:T(1,128)}', space=vmem, size = 0x12000, scoped, tag = 'internal scratch']
  %s0 = inlined_call_operand.vmem [shape: f32[24,128], index: 0, kind: input, shape index: {}]
  %s1 = inlined_call_operand.vmem [shape: s32[24,1], index: 1, kind: input, shape index: {}]
  %s2 = inlined_call_operand.hbm [shape: f32[8,128], index: 2, kind: output, shape index: {}]
  %s3 = sld [smem:[#allocation0]]
  $region22: #{tpu_custom_call.1} parent=0
    _
  %s5 = ssub.s32 1, %s3
  %s6 = scalar_select 0, %s5, %s3
  $region1: #{tpu_custom_call.1} parent=0
    #allocation2 [shape = 'u8[4096]{0}', space=vmem, size = 0x1000, scoped, tag = 'output window, operand 0, single buffered']
    #allocation3 [shape = 's32[1]{0}', space=sflag, size = 0x4, scoped, tag = 'scoped memory for tpu_custom_call.1']
    %7 = vsyncpa [#allocation3], 0
    // Predicated region
    $region2: #{tpu_custom_call.1} parent=1 // pred_check
      _
    $region3: #{tpu_custom_call.1} parent=1 // pred_check_branch
      %9 = sbr.rel (0) target = $region5
    $region4: #{tpu_custom_call.1} parent=1 // pred_region
      %s10 = sadd.s32 0, 0
      %s11 = smul.u32 3, %s10
      %p12 = scmp.lt.s32.totalorder %s11, 2
      %s13 = scalar_select %p12, %s11, 2
      %s14 = smul.addr %s13, 8
      %s15 = scalar_lea.vmem %s0, %s14
      %s16 = sadd.s32 0, 0
      %s17 = smul.u32 3, %s16
    $region5: #{tpu_custom_call.1} parent=1 // pred_fallthru
      _
    // Predicated region
    $region6: #{tpu_custom_call.1} parent=1 // pred_check
      _
    $region7: #{tpu_custom_call.1} parent=1 // pred_check_branch
      %19 = sbr.rel (0) target = $region9
    $region8: #{tpu_custom_call.1} parent=1 // pred_region
      %s20 = sadd.s32 0, 0
      %s21 = smul.u32 3, %s20
      %p22 = scmp.lt.s32.totalorder %s21, 2
      %s23 = scalar_select %p22, %s21, 2
      %s24 = smul.addr %s23, 8
      %s25 = scalar_lea.vmem %s1, %s24
      %s26 = sadd.s32 0, 0
      %s27 = smul.u32 3, %s26
    $region9: #{tpu_custom_call.1} parent=1 // pred_fallthru
      _
    %s28 = sadd.s32 0, 0
    %s29 = smul.u32 3, %s28
    %p30 = scmp.lt.s32.totalorder %s29, 2
    %s31 = scalar_select %p30, %s29, 2
    %s32 = smul.addr %s31, 8
    %s33 = scalar_lea.vmem %s0, %s32
    %s34 = sadd.s32 0, 0
    %s35 = smul.u32 3, %s34
    %p36 = scmp.lt.s32.totalorder %s35, 2
    %s37 = scalar_select %p36, %s35, 2
    %s38 = smul.addr %s37, 8
    %s39 = scalar_lea.vmem %s1, %s38
    %s40 = sadd.s32 0, 0
    %s41 = smul.u32 3, %s40
    %p42 = scmp.lt.s32.totalorder %s41, 2
    %s43 = scalar_select %p42, %s41, 2
    %s44 = smul.addr %s43, 8
    %s45 = scalar_lea.vmem %s0, %s44
    %s46 = sadd.s32 0, 0
    %s47 = smul.u32 3, %s46
    %s48 = sadd.s32 0, 0
    %s49 = smul.u32 3, %s48
    %p50 = scmp.lt.s32.totalorder %s49, 2
    %s51 = scalar_select %p50, %s49, 2
    %s52 = smul.addr %s51, 8
    %s53 = scalar_lea.vmem %s1, %s52
    %s54 = sadd.s32 0, 0
    %s55 = smul.u32 3, %s54
    %p56 = scmp.eq.s32.totalorder 0, 0
    // Predicated region
    $region10: #{tpu_custom_call.1} parent=1 // pred_check
      %p57 = pneg %p56
    $region11: #{tpu_custom_call.1} parent=1 // pred_check_branch
      %59 = sbr.rel (%p57) target = $region13
    $region12: #{tpu_custom_call.1} parent=1 // pred_region
      %60 = vst [vmem:[#allocation2] sm:$0xff] 0.0
    $region13: #{tpu_custom_call.1} parent=1 // pred_fallthru
      _
    %v61 = vld [vmem:[%s45] sm:$0xff]
    %v62 = vld [vmem:[%s45 + $0x8] sm:$0xff]
    %v63 = vld [vmem:[%s45 + $0x10] sm:$0xff]
    %64 = vmax.xlane.f32.xlu0 %v61
    %v65 = vpop.xlane.xlu0 %64
    %66 = vmax.xlane.f32.xlu0 %v62
    %v67 = vpop.xlane.xlu0 %66
    %68 = vmax.xlane.f32.xlu0 %v63
    %v69 = vpop.xlane.xlu0 %68
    %v70 = vsub.f32 %v61, %v65
    %v71 = vsub.f32 %v62, %v67
    %v72 = vsub.f32 %v63, %v69
    %v73 = vmul.f32 %v70, 1.442695
    %v74 = vpow.pop %v73
    %v75 = vmul.f32 %v71, 1.442695
    %v76 = vpow.pop %v75
    %v77 = vmul.f32 %v72, 1.442695
    %v78 = vpow.pop %v77
    %79 = vadd.xlane.f32.xlu0 %v74
    %v80 = vpop.xlane.xlu0 %79
    %81 = vadd.xlane.f32.xlu0 %v76
    %v82 = vpop.xlane.xlu0 %81
    %83 = vadd.xlane.f32.xlu0 %v78
    %v84 = vpop.xlane.xlu0 %83
    %v85 = vlog2.pop %v80
    %v86 = vmul.f32 %v85, 0.6931472
    %v87 = vlog2.pop %v82
    %v88 = vmul.f32 %v87, 0.6931472
    %v89 = vlog2.pop %v84
    %v90 = vmul.f32 %v89, 0.6931472
    %v91 = vsub.f32 2.0, %v61
    %v92 = vsub.f32 2.0, %v62
    %v93 = vsub.f32 2.0, %v63
    %v94 = vmax.f32 %v91, -10.0
    %v95 = vmax.f32 %v92, -10.0
    %v96 = vmax.f32 %v93, -10.0
    %v97 = vmin.f32 %v94, 4.0
    %v98 = vmin.f32 %v95, 4.0
    %v99 = vmin.f32 %v96, 4.0
    %v100 = vmul.f32 %v97, 1.442695
    %v101 = vpow.pop %v100
    %v102 = vmul.f32 %v98, 1.442695
    %v103 = vpow.pop %v102
    %v104 = vmul.f32 %v99, 1.442695
    %v105 = vpow.pop %v104
    %v106 = vsub.f32 %v101, %v70
    %v107 = vsub.f32 %v103, %v71
    %v108 = vsub.f32 %v105, %v72
    %s109 = sadd.s32 0, 0
    %s110 = smul.u32 %s109, 24
    %v111 = vlaneseq
    %v112 = vshrl.u32 %v111, 7
    %v113 = vadd.s32 %v112, 8
    %v114 = vadd.s32 %v112, 16
    %v115 = vstv %s110
    %v116 = vadd.s32 %v115, %v112
    %v117 = vadd.s32 %v115, %v113
    %v118 = vadd.s32 %v115, %v114
    %vm119 = vcmp.lt.s32.totalorder %v116, 19
    %vm120 = vcmp.lt.s32.totalorder %v117, 19
    %vm121 = vcmp.lt.s32.totalorder %v118, 19
    %v122 = vsel %vm119, 1, 0
    %v123 = vsel %vm120, 1, 0
    %v124 = vsel %vm121, 1, 0
    %v125 = vcvt.s32.f32 %v122
    %v126 = vcvt.s32.f32 %v123
    %v127 = vcvt.s32.f32 %v124
    %v128 = vmul.f32 %v125, 0.9007813
    %v129 = vmul.f32 %v126, 0.9007813
    %v130 = vmul.f32 %v127, 0.9007813
    %v131 = vmul.f32 %v125, 0.00078125
    %v132 = vmul.f32 %v126, 0.00078125
    %v133 = vmul.f32 %v127, 0.00078125
    %v134 = vmul.f32 %v86, %v125
    %v135 = vmul.f32 %v88, %v126
    %v136 = vmul.f32 %v90, %v127
    %v137 = vlaneseq
    %v138 = vand.u32 %v137, 127
    %v139 = vld [vmem:[%s53] sm:$0xff]
    %v140 = vld [vmem:[%s53 + $0x8] sm:$0xff]
    %v141 = vld [vmem:[%s53 + $0x10] sm:$0xff]
    %142 = vset.pattern.permute.xlu0 0
    %143 = vperm.xlu0 %142, %v139
    %v144 = vpop.permute.xlu0 %143
    %145 = vset.pattern.permute.xlu0 0
    %146 = vperm.xlu0 %145, %v140
    %v147 = vpop.permute.xlu0 %146
    %148 = vset.pattern.permute.xlu0 0
    %149 = vperm.xlu0 %148, %v141
    %v150 = vpop.permute.xlu0 %149
    %vm151 = vcmp.eq.s32.totalorder %v138, %v144
    %vm152 = vcmp.eq.s32.totalorder %v138, %v147
    %vm153 = vcmp.eq.s32.totalorder %v138, %v150
    %v154 = vsel %vm151, %v128, %v131
    %v155 = vsel %vm152, %v129, %v132
    %v156 = vsel %vm153, %v130, %v133
    %v157 = vmul.f32 %v106, %v154
    %v158 = vmul.f32 %v107, %v155
    %v159 = vmul.f32 %v108, %v156
    %v160 = vmul.f32 %v134, 0.0078125
    %v161 = vmul.f32 %v135, 0.0078125
    %v162 = vmul.f32 %v136, 0.0078125
    %v163 = vadd.f32 %v157, %v160
    %v164 = vadd.f32 %v158, %v161
    %v165 = vadd.f32 %v159, %v162
    %v166 = vld [vmem:[#allocation2] sm:$0xff]
    %v167 = vadd.f32 %v163, %v164
    %v168 = vadd.f32 %v167, %v165
    %v169 = vadd.f32 %v166, %v168
    %170 = vst [vmem:[#allocation2] sm:$0xff] %v169
    // Predicated region
    $region14: #{tpu_custom_call.1} parent=1 // pred_check
      _
    $region15: #{tpu_custom_call.1} parent=1 // pred_check_branch
      %172 = sbr.rel (0) target = $region17
    $region16: #{tpu_custom_call.1} parent=1 // pred_region
      %s174 = ssub.s32 128, 128
      %175 = vsyncadd [#allocation3], %s174
      %s177 = sshll.u32 [#allocation2], 4
      %s178 = int_to_ptr.vmem [resolvable:$true] %s177
      %180 = dma.vmem_to_hbm [thread:$0]  %s178, 128, %s2, [#allocation3]
    $region17: #{tpu_custom_call.1} parent=1 // pred_fallthru
      _
    // Predicated region
    $region18: #{tpu_custom_call.1} parent=1 // pred_check
      _
    $region19: #{tpu_custom_call.1} parent=1 // pred_check_branch
      %182 = sbr.rel (0) target = $region21
    $region20: #{tpu_custom_call.1} parent=1 // pred_region
      %183 = dma.done [#allocation3], 128
    $region21: #{tpu_custom_call.1} parent=1 // pred_fallthru
      _
    %184 = vsyncpa [#allocation3], 1

</llo_original>
